<compile_context>
chip_gen: v6e
topology: v6e:2x2x1
jax: 0.10.0
libtpu: 0.0.40
codegen_flags: <defaults>
</compile_context>

<pallas_src>
import jax
import jax.numpy as jnp
from jax.experimental import pallas as pl
from jax.experimental.pallas import tpu as pltpu

_K_PAD = 8        # input features (3) zero-padded to the 8-sublane boundary
_HIDDEN = 64
_TILE_B = 2048    # batch (lane) tile; multiple of 128


def _softplus(x):
    # Matches F.softplus(beta=1, threshold=20): returns x where x > 20.
    return jnp.where(x > 20.0, x, jnp.log1p(jnp.exp(jnp.minimum(x, 20.0))))


def policy_kernel(x_ref, w1_ref, b1_ref, w2_ref, b2_ref, w34_ref, b34_ref,
                  mu_ref, sigma_ref):
    x_t = x_ref[...]                                                        # (8, TB)

    h1 = jnp.dot(w1_ref[...], x_t, preferred_element_type=jnp.float32)     # (64, TB)
    h1 = jnp.maximum(h1 + b1_ref[...], 0.0)

    h2 = jnp.dot(w2_ref[...], h1, preferred_element_type=jnp.float32)      # (64, TB)
    h2 = jnp.maximum(h2 + b2_ref[...], 0.0)

    heads = jnp.dot(w34_ref[...], h2, preferred_element_type=jnp.float32)  # (2, TB)
    heads = heads + b34_ref[...]

    # Row 0 = mu (identity), row 1 = sigma (softplus on that row only).
    mu_ref[...] = heads[0:1, :]
    sigma_ref[...] = _softplus(heads[1:2, :])


def _round_up(n, m):
    return ((n + m - 1) // m) * m


def policy_forward(x, params, *, tile_b=_TILE_B):
    """x: any shape squeezing to (B, 3). Returns (mu, sigma), each (B, 1) float32."""
    x = jnp.squeeze(x)                      # mirrors torch.squeeze
    if x.ndim == 1:                         # single sample -> (1, 3)
        x = x[None, :]
    x = x.astype(jnp.float32)
    B, K = x.shape

    w1, b1, w2, b2, w34, b34 = params       # w1 already padded to (64, _K_PAD)

    # Lane tile: multiple of 128; aim for >= 2 grid steps when the batch allows
    # so v7x can shard across both TensorCores (harmless on v5e/v6e).
    b128 = _round_up(B, 128)
    half = _round_up(-(-b128 // 2), 128)
    tb = max(128, min(tile_b, half))
    b_pad = _round_up(B, tb)

    # Feature-major input: (K_PAD, b_pad), zero padding is harmless (w1's padded
    # columns are zero; padded batch columns are sliced off afterwards).
    x_t = jnp.pad(x.T, ((0, _K_PAD - K), (0, b_pad - B)))

    def resident(shape):
        return pl.BlockSpec(shape, lambda i: (0, 0))

    mu_t, sigma_t = pl.pallas_call(
        policy_kernel,
        out_shape=(jax.ShapeDtypeStruct((1, b_pad), jnp.float32),
                   jax.ShapeDtypeStruct((1, b_pad), jnp.float32)),
        grid=(b_pad // tb,),
        in_specs=[
            pl.BlockSpec((_K_PAD, tb), lambda i: (0, i)),   # x: streamed per tile
            resident(w1.shape), resident(b1.shape),         # weights/biases resident
            resident(w2.shape), resident(b2.shape),
            resident(w34.shape), resident(b34.shape),
        ],
        out_specs=(pl.BlockSpec((1, tb), lambda i: (0, i)),
                   pl.BlockSpec((1, tb), lambda i: (0, i))),
        compiler_params=pltpu.CompilerParams(
            dimension_semantics=("parallel",)),
    )(x_t, w1, b1, w2, b2, w34, b34)

    mu = mu_t[0, :B][:, None]
    sigma = sigma_t[0, :B][:, None]
    return mu, sigma


def init_params(key):
    """Deterministic init mimicking nn.Linear default (uniform +/- 1/sqrt(fan_in)).

    Weights are stored (out, in) like nn.Linear; biases as (out, 1).
    w1 is zero-padded from (64, 3) to (64, _K_PAD); the two 64->1 heads are fused
    into a single (2, 64) weight / (2, 1) bias (row 0 = mu head, row 1 = sigma head).
    """
    def linear(key, fan_in, fan_out):
        kw, kb = jax.random.split(key)
        bound = 1.0 / jnp.sqrt(fan_in)
        w = jax.random.uniform(kw, (fan_out, fan_in), jnp.float32, -bound, bound)
        b = jax.random.uniform(kb, (fan_out, 1), jnp.float32, -bound, bound)
        return w, b

    k1, k2, k3, k4 = jax.random.split(key, 4)
    w1, b1 = linear(k1, 3, _HIDDEN)
    w2, b2 = linear(k2, _HIDDEN, _HIDDEN)
    w3, b3 = linear(k3, _HIDDEN, 1)
    w4, b4 = linear(k4, _HIDDEN, 1)

    w1_pad = jnp.zeros((_HIDDEN, _K_PAD), jnp.float32).at[:, :3].set(w1)
    w34 = jnp.concatenate([w3, w4], axis=0)      # (2, 64)
    b34 = jnp.concatenate([b3, b4], axis=0)      # (2, 1)
    return (w1_pad, b1, w2, b2, w34, b34)


def reference_forward(x, params):
    x = jnp.squeeze(x)
    if x.ndim == 1:
        x = x[None, :]
    x = x.astype(jnp.float32)
    w1_pad, b1, w2, b2, w34, b34 = params
    h1 = jax.nn.relu(x @ w1_pad[:, :3].T + b1[:, 0])
    h2 = jax.nn.relu(h1 @ w2.T + b2[:, 0])
    heads = h2 @ w34.T + b34[:, 0]               # (B, 2)
    mu = heads[:, 0:1]
    sigma = jax.nn.softplus(heads[:, 1:2])
    return mu, sigma


if __name__ == "__main__":
    key = jax.random.PRNGKey(0)
    k_param, k_x = jax.random.split(key)

    params = init_params(k_param)
    # Small batch of observations, shaped (B, 1, 3) to exercise the squeeze.
    x = jax.random.normal(k_x, (8, 1, 3), dtype=jnp.float32)

    mu, sigma = policy_forward(x, params)
    jax.block_until_ready((mu, sigma))

    mu_ref, sigma_ref = reference_forward(x, params)
    assert mu.shape == (8, 1) and sigma.shape == (8, 1)
    assert jnp.allclose(mu, mu_ref, atol=1e-5, rtol=1e-5)
    assert jnp.allclose(sigma, sigma_ref, atol=1e-5, rtol=1e-5)
    assert bool(jnp.all(sigma > 0.0))

    print("KERNEL_OK")
</pallas_src>

<mosaic_0001>
module attributes {stable_mosaic.version = 11 : i64} {
  func.func @policy_kernel(%arg0: i32, %arg1: memref<8x128xf32, #tpu.memory_space<vmem>>, %arg2: memref<64x8xf32, #tpu.memory_space<vmem>>, %arg3: memref<64x1xf32, #tpu.memory_space<vmem>>, %arg4: memref<64x64xf32, #tpu.memory_space<vmem>>, %arg5: memref<64x1xf32, #tpu.memory_space<vmem>>, %arg6: memref<2x64xf32, #tpu.memory_space<vmem>>, %arg7: memref<2x1xf32, #tpu.memory_space<vmem>>, %arg8: memref<1x128xf32, #tpu.memory_space<vmem>>, %arg9: memref<1x128xf32, #tpu.memory_space<vmem>>) attributes {dimension_semantics = [#tpu.dimension_semantics<parallel>], iteration_bounds = array<i64: 1>, scalar_prefetch = 0 : i64, scratch_operands = 0 : i64, tpu.core_type = #tpu.core_type<tc>, window_params = [{transform_indices = @transform_0, window_bounds = array<i64: 8, 128>}, {pipeline_mode = #tpu.pipeline_mode<synchronous>, transform_indices = @transform_1, window_bounds = array<i64: 64, 8>}, {pipeline_mode = #tpu.pipeline_mode<synchronous>, transform_indices = @transform_2, window_bounds = array<i64: 64, 1>}, {pipeline_mode = #tpu.pipeline_mode<synchronous>, transform_indices = @transform_3, window_bounds = array<i64: 64, 64>}, {pipeline_mode = #tpu.pipeline_mode<synchronous>, transform_indices = @transform_4, window_bounds = array<i64: 64, 1>}, {pipeline_mode = #tpu.pipeline_mode<synchronous>, transform_indices = @transform_5, window_bounds = array<i64: 2, 64>}, {pipeline_mode = #tpu.pipeline_mode<synchronous>, transform_indices = @transform_6, window_bounds = array<i64: 2, 1>}, {transform_indices = @transform_7, window_bounds = array<i64: 1, 128>}, {transform_indices = @transform_8, window_bounds = array<i64: 1, 128>}]} {
    %c0 = arith.constant 0 : index
    %c0_0 = arith.constant 0 : index
    %0 = vector.load %arg1[%c0, %c0_0] : memref<8x128xf32, #tpu.memory_space<vmem>>, vector<8x128xf32>
    %c0_1 = arith.constant 0 : index
    %c0_2 = arith.constant 0 : index
    %1 = vector.load %arg2[%c0_1, %c0_2] : memref<64x8xf32, #tpu.memory_space<vmem>>, vector<64x8xf32>
    %cst = arith.constant dense<0.000000e+00> : vector<64x128xf32>
    %2 = tpu.matmul %1, %0, %cst {dimension_numbers = #tpu.dot_dimension_numbers<[1], [0], [0], [1], [0, 0, 1, 1], [], []>} : vector<64x8xf32>, vector<8x128xf32>, vector<64x128xf32> -> vector<64x128xf32>
    %c0_3 = arith.constant 0 : index
    %c0_4 = arith.constant 0 : index
    %3 = vector.load %arg3[%c0_3, %c0_4] : memref<64x1xf32, #tpu.memory_space<vmem>>, vector<64x1xf32>
    %4 = vector.broadcast %3 : vector<64x1xf32> to vector<64x128xf32>
    %5 = arith.addf %2, %4 : vector<64x128xf32>
    %cst_5 = arith.constant 0.000000e+00 : f32
    %6 = vector.broadcast %cst_5 : f32 to vector<64x128xf32>
    %7 = arith.maximumf %5, %6 : vector<64x128xf32>
    %c0_6 = arith.constant 0 : index
    %c0_7 = arith.constant 0 : index
    %8 = vector.load %arg4[%c0_6, %c0_7] : memref<64x64xf32, #tpu.memory_space<vmem>>, vector<64x64xf32>
    %cst_8 = arith.constant dense<0.000000e+00> : vector<64x128xf32>
    %9 = tpu.matmul %8, %7, %cst_8 {dimension_numbers = #tpu.dot_dimension_numbers<[1], [0], [0], [1], [0, 0, 1, 1], [], []>} : vector<64x64xf32>, vector<64x128xf32>, vector<64x128xf32> -> vector<64x128xf32>
    %c0_9 = arith.constant 0 : index
    %c0_10 = arith.constant 0 : index
    %10 = vector.load %arg5[%c0_9, %c0_10] : memref<64x1xf32, #tpu.memory_space<vmem>>, vector<64x1xf32>
    %11 = vector.broadcast %10 : vector<64x1xf32> to vector<64x128xf32>
    %12 = arith.addf %9, %11 : vector<64x128xf32>
    %cst_11 = arith.constant 0.000000e+00 : f32
    %13 = vector.broadcast %cst_11 : f32 to vector<64x128xf32>
    %14 = arith.maximumf %12, %13 : vector<64x128xf32>
    %c0_12 = arith.constant 0 : index
    %c0_13 = arith.constant 0 : index
    %15 = vector.load %arg6[%c0_12, %c0_13] : memref<2x64xf32, #tpu.memory_space<vmem>>, vector<2x64xf32>
    %cst_14 = arith.constant dense<0.000000e+00> : vector<2x128xf32>
    %16 = tpu.matmul %15, %14, %cst_14 {dimension_numbers = #tpu.dot_dimension_numbers<[1], [0], [0], [1], [0, 0, 1, 1], [], []>} : vector<2x64xf32>, vector<64x128xf32>, vector<2x128xf32> -> vector<2x128xf32>
    %c0_15 = arith.constant 0 : index
    %c0_16 = arith.constant 0 : index
    %17 = vector.load %arg7[%c0_15, %c0_16] : memref<2x1xf32, #tpu.memory_space<vmem>>, vector<2x1xf32>
    %18 = vector.broadcast %17 : vector<2x1xf32> to vector<2x128xf32>
    %19 = arith.addf %16, %18 : vector<2x128xf32>
    %20 = vector.extract_strided_slice %19 {offsets = [0, 0], sizes = [1, 128], strides = [1, 1]} : vector<2x128xf32> to vector<1x128xf32>
    %c0_17 = arith.constant 0 : index
    %c0_18 = arith.constant 0 : index
    %21 = vector.load %arg8[%c0_17, %c0_18] : memref<1x128xf32, #tpu.memory_space<vmem>>, vector<1x128xf32>
    tpu.vector_store %arg8[%c0_17, %c0_18], %20 {strides = array<i32>} : memref<1x128xf32, #tpu.memory_space<vmem>>, vector<1x128xf32>,
    %22 = vector.extract_strided_slice %19 {offsets = [1, 0], sizes = [1, 128], strides = [1, 1]} : vector<2x128xf32> to vector<1x128xf32>
    %cst_19 = arith.constant 2.000000e+01 : f32
    %23 = vector.broadcast %cst_19 : f32 to vector<1x128xf32>
    %24 = arith.cmpf ogt, %22, %23 : vector<1x128xf32>
    %cst_20 = arith.constant 2.000000e+01 : f32
    %25 = vector.broadcast %cst_20 : f32 to vector<1x128xf32>
    %26 = arith.minimumf %22, %25 : vector<1x128xf32>
    %27 = math.exp %26 : vector<1x128xf32>
    %28 = math.log1p %27 : vector<1x128xf32>
    %29 = arith.select %24, %22, %28 : vector<1x128xi1>, vector<1x128xf32>
    %c0_21 = arith.constant 0 : index
    %c0_22 = arith.constant 0 : index
    %30 = vector.load %arg9[%c0_21, %c0_22] : memref<1x128xf32, #tpu.memory_space<vmem>>, vector<1x128xf32>
    tpu.vector_store %arg9[%c0_21, %c0_22], %29 {strides = array<i32>} : memref<1x128xf32, #tpu.memory_space<vmem>>, vector<1x128xf32>,
    return
  }
  func.func @transform_0(%arg0: i32) -> (i32, i32) {
    %c0_i32 = arith.constant 0 : i32
    %c0_i32_0 = arith.constant 0 : i32
    return %c0_i32, %arg0 : i32, i32
  }
  func.func @transform_1(%arg0: i32) -> (i32, i32) {
    %c0_i32 = arith.constant 0 : i32
    %c0_i32_0 = arith.constant 0 : i32
    %c0_i32_1 = arith.constant 0 : i32
    return %c0_i32, %c0_i32_0 : i32, i32
  }
  func.func @transform_2(%arg0: i32) -> (i32, i32) {
    %c0_i32 = arith.constant 0 : i32
    %c0_i32_0 = arith.constant 0 : i32
    %c0_i32_1 = arith.constant 0 : i32
    return %c0_i32, %c0_i32_0 : i32, i32
  }
  func.func @transform_3(%arg0: i32) -> (i32, i32) {
    %c0_i32 = arith.constant 0 : i32
    %c0_i32_0 = arith.constant 0 : i32
    %c0_i32_1 = arith.constant 0 : i32
    return %c0_i32, %c0_i32_0 : i32, i32
  }
  func.func @transform_4(%arg0: i32) -> (i32, i32) {
    %c0_i32 = arith.constant 0 : i32
    %c0_i32_0 = arith.constant 0 : i32
    %c0_i32_1 = arith.constant 0 : i32
    return %c0_i32, %c0_i32_0 : i32, i32
  }
  func.func @transform_5(%arg0: i32) -> (i32, i32) {
    %c0_i32 = arith.constant 0 : i32
    %c0_i32_0 = arith.constant 0 : i32
    %c0_i32_1 = arith.constant 0 : i32
    return %c0_i32, %c0_i32_0 : i32, i32
  }
  func.func @transform_6(%arg0: i32) -> (i32, i32) {
    %c0_i32 = arith.constant 0 : i32
    %c0_i32_0 = arith.constant 0 : i32
    %c0_i32_1 = arith.constant 0 : i32
    return %c0_i32, %c0_i32_0 : i32, i32
  }
  func.func @transform_7(%arg0: i32) -> (i32, i32) {
    %c0_i32 = arith.constant 0 : i32
    %c0_i32_0 = arith.constant 0 : i32
    return %c0_i32, %arg0 : i32, i32
  }
  func.func @transform_8(%arg0: i32) -> (i32, i32) {
    %c0_i32 = arith.constant 0 : i32
    %c0_i32_0 = arith.constant 0 : i32
    return %c0_i32, %arg0 : i32, i32
  }
}

</mosaic_0001>

<llo_original>
// kernel: tpu_custom_call.1
$region0: #{tpu_custom_call.1}
  #allocation0 [shape = 'u32[]', space=smem, size = 0x4, offset = 0x4, fixed_abs, tag = 'smem constant byte address 0x4 - core index']
  #allocation1 [shape = 'u32[144,128]{1,0:T(1,128)}', space=vmem, size = 0x12000, scoped, tag = 'internal scratch']
  %s0 = inlined_call_operand.vmem [shape: f32[8,128], index: 0, kind: input, shape index: {}]
  %s1 = inlined_call_operand.vmem [shape: f32[64,8], index: 1, kind: input, shape index: {}]
  %s2 = inlined_call_operand.vmem [shape: f32[64,1], index: 2, kind: input, shape index: {}]
  %s3 = inlined_call_operand.vmem [shape: f32[64,64], index: 3, kind: input, shape index: {}]
  %s4 = inlined_call_operand.vmem [shape: f32[64,1], index: 4, kind: input, shape index: {}]
  %s5 = inlined_call_operand.vmem [shape: f32[2,64], index: 5, kind: input, shape index: {}]
  %s6 = inlined_call_operand.vmem [shape: f32[2,1], index: 6, kind: input, shape index: {}]
  %s7 = inlined_call_operand.hbm [shape: f32[1,128], index: 7, kind: output, shape index: {0}]
  %s8 = inlined_call_operand.hbm [shape: f32[1,128], index: 8, kind: output, shape index: {1}]
  %9 = xla_tuple %s7, %s8
  %s10 = sld [smem:[#allocation0]]
  $region46: #{tpu_custom_call.1} parent=0
    _
  %s12 = ssub.s32 1, %s10
  %s13 = scalar_select 0, %s12, %s10
  $region1: #{tpu_custom_call.1} parent=0
    #allocation2 [shape = 'u8[512]{0}', space=vmem, size = 0x400, scoped, tag = 'output window, operand 0, single buffered']
    #allocation3 [shape = 's32[1]{0}', space=sflag, size = 0x4, scoped, tag = 'scoped memory for tpu_custom_call.1']
    #allocation4 [shape = 'u8[512]{0}', space=vmem, size = 0x400, scoped, tag = 'output window, operand 1, single buffered']
    #allocation5 [shape = 's32[1]{0}', space=sflag, size = 0x4, scoped, tag = 'scoped memory for tpu_custom_call.1']
    %14 = vsyncpa [#allocation3], 0
    %15 = vsyncpa [#allocation5], 0
    // Predicated region
    $region2: #{tpu_custom_call.1} parent=1 // pred_check
      _
    $region3: #{tpu_custom_call.1} parent=1 // pred_check_branch
      %17 = sbr.rel (0) target = $region5
    $region4: #{tpu_custom_call.1} parent=1 // pred_region
      _
    $region5: #{tpu_custom_call.1} parent=1 // pred_fallthru
      _
    // Predicated region
    $region6: #{tpu_custom_call.1} parent=1 // pred_check
      _
    $region7: #{tpu_custom_call.1} parent=1 // pred_check_branch
      %19 = sbr.rel (0) target = $region9
    $region8: #{tpu_custom_call.1} parent=1 // pred_region
      _
    $region9: #{tpu_custom_call.1} parent=1 // pred_fallthru
      _
    // Predicated region
    $region10: #{tpu_custom_call.1} parent=1 // pred_check
      _
    $region11: #{tpu_custom_call.1} parent=1 // pred_check_branch
      %21 = sbr.rel (0) target = $region13
    $region12: #{tpu_custom_call.1} parent=1 // pred_region
      _
    $region13: #{tpu_custom_call.1} parent=1 // pred_fallthru
      _
    // Predicated region
    $region14: #{tpu_custom_call.1} parent=1 // pred_check
      _
    $region15: #{tpu_custom_call.1} parent=1 // pred_check_branch
      %23 = sbr.rel (0) target = $region17
    $region16: #{tpu_custom_call.1} parent=1 // pred_region
      _
    $region17: #{tpu_custom_call.1} parent=1 // pred_fallthru
      _
    // Predicated region
    $region18: #{tpu_custom_call.1} parent=1 // pred_check
      _
    $region19: #{tpu_custom_call.1} parent=1 // pred_check_branch
      %25 = sbr.rel (0) target = $region21
    $region20: #{tpu_custom_call.1} parent=1 // pred_region
      _
    $region21: #{tpu_custom_call.1} parent=1 // pred_fallthru
      _
    // Predicated region
    $region22: #{tpu_custom_call.1} parent=1 // pred_check
      _
    $region23: #{tpu_custom_call.1} parent=1 // pred_check_branch
      %27 = sbr.rel (0) target = $region25
    $region24: #{tpu_custom_call.1} parent=1 // pred_region
      _
    $region25: #{tpu_custom_call.1} parent=1 // pred_fallthru
      _
    // Predicated region
    $region26: #{tpu_custom_call.1} parent=1 // pred_check
      _
    $region27: #{tpu_custom_call.1} parent=1 // pred_check_branch
      %29 = sbr.rel (0) target = $region29
    $region28: #{tpu_custom_call.1} parent=1 // pred_region
      _
    $region29: #{tpu_custom_call.1} parent=1 // pred_fallthru
      _
    %v30 = vld [vmem:[%s0] sm:$0xff]
    %v31 = vld [vmem:[%s1] sm:$0xff]
    %v32 = vld [vmem:[%s1 + $0x8] sm:$0xff]
    %v33 = vld [vmem:[%s1 + $0x10] sm:$0xff]
    %v34 = vld [vmem:[%s1 + $0x18] sm:$0xff]
    %v35 = vld [vmem:[%s1 + $0x20] sm:$0xff]
    %v36 = vld [vmem:[%s1 + $0x28] sm:$0xff]
    %v37 = vld [vmem:[%s1 + $0x30] sm:$0xff]
    %v38 = vld [vmem:[%s1 + $0x38] sm:$0xff]
    %v39 = vld [vmem:[%s2] sm:$0xff]
    %v40 = vld [vmem:[%s2 + $0x8] sm:$0xff]
    %v41 = vld [vmem:[%s2 + $0x10] sm:$0xff]
    %v42 = vld [vmem:[%s2 + $0x18] sm:$0xff]
    %v43 = vld [vmem:[%s2 + $0x20] sm:$0xff]
    %v44 = vld [vmem:[%s2 + $0x28] sm:$0xff]
    %v45 = vld [vmem:[%s2 + $0x30] sm:$0xff]
    %v46 = vld [vmem:[%s2 + $0x38] sm:$0xff]
    %48 = vset.pattern.permute.xlu0 0
    %49 = vperm.xlu0 %48, %v39
    %v50 = vpop.permute.xlu0 %49
    %53 = vset.pattern.permute.xlu0 0
    %54 = vperm.xlu0 %53, %v40
    %v55 = vpop.permute.xlu0 %54
    %58 = vset.pattern.permute.xlu0 0
    %59 = vperm.xlu0 %58, %v41
    %v60 = vpop.permute.xlu0 %59
    %63 = vset.pattern.permute.xlu0 0
    %64 = vperm.xlu0 %63, %v42
    %v65 = vpop.permute.xlu0 %64
    %68 = vset.pattern.permute.xlu0 0
    %69 = vperm.xlu0 %68, %v43
    %v70 = vpop.permute.xlu0 %69
    %73 = vset.pattern.permute.xlu0 0
    %74 = vperm.xlu0 %73, %v44
    %v75 = vpop.permute.xlu0 %74
    %78 = vset.pattern.permute.xlu0 0
    %79 = vperm.xlu0 %78, %v45
    %v80 = vpop.permute.xlu0 %79
    %83 = vset.pattern.permute.xlu0 0
    %84 = vperm.xlu0 %83, %v46
    %v85 = vpop.permute.xlu0 %84
    %vm87 = vcmask 64512
    %v89 = vsel %vm87, %v31, 0
    %v92 = vsel %vm87, %v32, 0
    %v95 = vsel %vm87, %v33, 0
    %v98 = vsel %vm87, %v34, 0
    %v101 = vsel %vm87, %v35, 0
    %v104 = vsel %vm87, %v36, 0
    %v107 = vsel %vm87, %v37, 0
    %v110 = vsel %vm87, %v38, 0
    %112 = vmatprep.subr.mxu0 0.0
    %113 = vmatpush1.msra.mxu0 0.0
    %114 = vmatprep.subr.mxu0 0.0
    %115 = vmatpush1.msra.mxu0 0.0
    %116 = vmatprep.subr.mxu0 0.0
    %117 = vmatpush1.msra.mxu0 0.0
    %118 = vmatprep.subr.mxu0 0.0
    %119 = vmatpush1.msra.mxu0 0.0
    %120 = vmatprep.subr.mxu0 0.0
    %121 = vmatpush1.msra.mxu0 0.0
    %122 = vmatprep.subr.mxu0 0.0
    %123 = vmatpush1.msra.mxu0 0.0
    %124 = vmatprep.subr.mxu0 0.0
    %125 = vmatpush1.msra.mxu0 0.0
    %126 = vmatprep.subr.mxu0 0.0
    %127 = vmatpush1.msra.mxu0 0.0
    %128 = vmatprep.subr.mxu0 0.0
    %129 = vmatpush1.msra.mxu0 0.0
    %130 = vmatprep.subr.mxu0 0.0
    %131 = vmatpush1.msra.mxu0 0.0
    %132 = vmatprep.subr.mxu0 0.0
    %133 = vmatpush1.msra.mxu0 0.0
    %134 = vmatprep.subr.mxu0 0.0
    %135 = vmatpush1.msra.mxu0 0.0
    %136 = vmatprep.subr.mxu0 0.0
    %137 = vmatpush1.msra.mxu0 0.0
    %138 = vmatprep.subr.mxu0 0.0
    %139 = vmatpush1.msra.mxu0 0.0
    %140 = vmatprep.subr.mxu0 0.0
    %141 = vmatpush1.msra.mxu0 0.0
    %142 = vmatprep.subr.mxu0 0.0
    %143 = vmatpush1.msra.mxu0 %v30
    %144 = vmatprep.subr.mxu0 0.0
    %145 = vmatpush2.msra.mxu0 0.0
    %146 = vmatprep.subr.mxu0 0.0
    %147 = vmatpush2.msra.mxu0 0.0
    %148 = vmatprep.subr.mxu0 0.0
    %149 = vmatpush2.msra.mxu0 0.0
    %150 = vmatprep.subr.mxu0 0.0
    %151 = vmatpush2.msra.mxu0 0.0
    %152 = vmatprep.subr.mxu0 0.0
    %153 = vmatpush2.msra.mxu0 0.0
    %154 = vmatprep.subr.mxu0 0.0
    %155 = vmatpush2.msra.mxu0 0.0
    %156 = vmatprep.subr.mxu0 0.0
    %157 = vmatpush2.msra.mxu0 0.0
    %158 = vmatprep.subr.mxu0 0.0
    %159 = vmatpush2.msra.mxu0 0.0
    %160 = vmatprep.subr.mxu0 0.0
    %161 = vmatpush2.msra.mxu0 0.0
    %162 = vmatprep.subr.mxu0 0.0
    %163 = vmatpush2.msra.mxu0 0.0
    %164 = vmatprep.subr.mxu0 0.0
    %165 = vmatpush2.msra.mxu0 0.0
    %166 = vmatprep.subr.mxu0 0.0
    %167 = vmatpush2.msra.mxu0 0.0
    %168 = vmatprep.subr.mxu0 0.0
    %169 = vmatpush2.msra.mxu0 0.0
    %170 = vmatprep.subr.mxu0 0.0
    %171 = vmatpush2.msra.mxu0 0.0
    %172 = vmatprep.subr.mxu0 0.0
    %173 = vmatpush2.msra.mxu0 0.0
    %174 = vmatprep.subr.mxu0 0.0
    %175 = vmatpush2.msra.mxu0 0.0
    %176 = vmatprep.mubr.f32.mxu0 0.0
    %177 = vmatmul.mubr.f32.gmra.mxu0 %v89
    %v178 = vpop.f32.mrf.mxu0
    %v179 = vadd.f32 %v50, %v178
    %v180 = vpop.f32.mrf.mxu0
    %181 = vmatprep.mubr.f32.mxu0 0.0
    %182 = vmatmul.mubr.f32.gmra.mxu0 %v92
    %v183 = vpop.f32.mrf.mxu0
    %v184 = vadd.f32 %v55, %v183
    %v185 = vpop.f32.mrf.mxu0
    %186 = vmatprep.mubr.f32.mxu0 0.0
    %187 = vmatmul.mubr.f32.gmra.mxu0 %v95
    %v188 = vpop.f32.mrf.mxu0
    %v189 = vadd.f32 %v60, %v188
    %v190 = vpop.f32.mrf.mxu0
    %191 = vmatprep.mubr.f32.mxu0 0.0
    %192 = vmatmul.mubr.f32.gmra.mxu0 %v98
    %v193 = vpop.f32.mrf.mxu0
    %v194 = vadd.f32 %v65, %v193
    %v195 = vpop.f32.mrf.mxu0
    %196 = vmatprep.mubr.f32.mxu0 0.0
    %197 = vmatmul.mubr.f32.gmra.mxu0 %v101
    %v198 = vpop.f32.mrf.mxu0
    %v199 = vadd.f32 %v70, %v198
    %v200 = vpop.f32.mrf.mxu0
    %201 = vmatprep.mubr.f32.mxu0 0.0
    %202 = vmatmul.mubr.f32.gmra.mxu0 %v104
    %v203 = vpop.f32.mrf.mxu0
    %v204 = vadd.f32 %v75, %v203
    %v205 = vpop.f32.mrf.mxu0
    %206 = vmatprep.mubr.f32.mxu0 0.0
    %207 = vmatmul.mubr.f32.gmra.mxu0 %v107
    %v208 = vpop.f32.mrf.mxu0
    %v209 = vadd.f32 %v80, %v208
    %v210 = vpop.f32.mrf.mxu0
    %211 = vmatprep.mubr.f32.mxu0 0.0
    %212 = vmatmul.mubr.f32.gmra.mxu0 %v110
    %v213 = vpop.f32.mrf.mxu0
    %v214 = vadd.f32 %v85, %v213
    %v215 = vpop.f32.mrf.mxu0
    %216 = vdwg.mxu0
    %v217 = vmax.f32 %v179, 0.0
    %v218 = vmax.f32 %v184, 0.0
    %v219 = vmax.f32 %v189, 0.0
    %v220 = vmax.f32 %v194, 0.0
    %v221 = vmax.f32 %v199, 0.0
    %v222 = vmax.f32 %v204, 0.0
    %v223 = vmax.f32 %v209, 0.0
    %v224 = vmax.f32 %v214, 0.0
    %v225 = vld [vmem:[%s3] sm:$0xff]
    %v226 = vld [vmem:[%s3 + $0x8] sm:$0xff]
    %v227 = vld [vmem:[%s3 + $0x10] sm:$0xff]
    %v228 = vld [vmem:[%s3 + $0x18] sm:$0xff]
    %v229 = vld [vmem:[%s3 + $0x20] sm:$0xff]
    %v230 = vld [vmem:[%s3 + $0x28] sm:$0xff]
    %v231 = vld [vmem:[%s3 + $0x30] sm:$0xff]
    %v232 = vld [vmem:[%s3 + $0x38] sm:$0xff]
    %v233 = vld [vmem:[%s4] sm:$0xff]
    %v234 = vld [vmem:[%s4 + $0x8] sm:$0xff]
    %v235 = vld [vmem:[%s4 + $0x10] sm:$0xff]
    %v236 = vld [vmem:[%s4 + $0x18] sm:$0xff]
    %v237 = vld [vmem:[%s4 + $0x20] sm:$0xff]
    %v238 = vld [vmem:[%s4 + $0x28] sm:$0xff]
    %v239 = vld [vmem:[%s4 + $0x30] sm:$0xff]
    %v240 = vld [vmem:[%s4 + $0x38] sm:$0xff]
    %242 = vset.pattern.permute.xlu0 0
    %243 = vperm.xlu0 %242, %v233
    %v244 = vpop.permute.xlu0 %243
    %247 = vset.pattern.permute.xlu0 0
    %248 = vperm.xlu0 %247, %v234
    %v249 = vpop.permute.xlu0 %248
    %252 = vset.pattern.permute.xlu0 0
    %253 = vperm.xlu0 %252, %v235
    %v254 = vpop.permute.xlu0 %253
    %257 = vset.pattern.permute.xlu0 0
    %258 = vperm.xlu0 %257, %v236
    %v259 = vpop.permute.xlu0 %258
    %262 = vset.pattern.permute.xlu0 0
    %263 = vperm.xlu0 %262, %v237
    %v264 = vpop.permute.xlu0 %263
    %267 = vset.pattern.permute.xlu0 0
    %268 = vperm.xlu0 %267, %v238
    %v269 = vpop.permute.xlu0 %268
    %272 = vset.pattern.permute.xlu0 0
    %273 = vperm.xlu0 %272, %v239
    %v274 = vpop.permute.xlu0 %273
    %277 = vset.pattern.permute.xlu0 0
    %278 = vperm.xlu0 %277, %v240
    %v279 = vpop.permute.xlu0 %278
    %vm281 = vcmask 523264
    %v283 = vsel %vm281, %v225, 0
    %v286 = vsel %vm281, %v226, 0
    %v289 = vsel %vm281, %v227, 0
    %v292 = vsel %vm281, %v228, 0
    %v295 = vsel %vm281, %v229, 0
    %v298 = vsel %vm281, %v230, 0
    %v301 = vsel %vm281, %v231, 0
    %v304 = vsel %vm281, %v232, 0
    %306 = vmatprep.subr.mxu0 0.0
    %307 = vmatpush1.msra.mxu0 0.0
    %308 = vmatprep.subr.mxu0 0.0
    %309 = vmatpush1.msra.mxu0 0.0
    %310 = vmatprep.subr.mxu0 0.0
    %311 = vmatpush1.msra.mxu0 0.0
    %312 = vmatprep.subr.mxu0 0.0
    %313 = vmatpush1.msra.mxu0 0.0
    %314 = vmatprep.subr.mxu0 0.0
    %315 = vmatpush1.msra.mxu0 0.0
    %316 = vmatprep.subr.mxu0 0.0
    %317 = vmatpush1.msra.mxu0 0.0
    %318 = vmatprep.subr.mxu0 0.0
    %319 = vmatpush1.msra.mxu0 0.0
    %320 = vmatprep.subr.mxu0 0.0
    %321 = vmatpush1.msra.mxu0 0.0
    %322 = vmatprep.subr.mxu0 0.0
    %323 = vmatpush1.msra.mxu0 %v224
    %324 = vmatprep.subr.mxu0 0.0
    %325 = vmatpush1.msra.mxu0 %v223
    %326 = vmatprep.subr.mxu0 0.0
    %327 = vmatpush1.msra.mxu0 %v222
    %328 = vmatprep.subr.mxu0 0.0
    %329 = vmatpush1.msra.mxu0 %v221
    %330 = vmatprep.subr.mxu0 0.0
    %331 = vmatpush1.msra.mxu0 %v220
    %332 = vmatprep.subr.mxu0 0.0
    %333 = vmatpush1.msra.mxu0 %v219
    %334 = vmatprep.subr.mxu0 0.0
    %335 = vmatpush1.msra.mxu0 %v218
    %336 = vmatprep.subr.mxu0 0.0
    %337 = vmatpush1.msra.mxu0 %v217
    %338 = vmatprep.subr.mxu0 0.0
    %339 = vmatpush2.msra.mxu0 0.0
    %340 = vmatprep.subr.mxu0 0.0
    %341 = vmatpush2.msra.mxu0 0.0
    %342 = vmatprep.subr.mxu0 0.0
    %343 = vmatpush2.msra.mxu0 0.0
    %344 = vmatprep.subr.mxu0 0.0
    %345 = vmatpush2.msra.mxu0 0.0
    %346 = vmatprep.subr.mxu0 0.0
    %347 = vmatpush2.msra.mxu0 0.0
    %348 = vmatprep.subr.mxu0 0.0
    %349 = vmatpush2.msra.mxu0 0.0
    %350 = vmatprep.subr.mxu0 0.0
    %351 = vmatpush2.msra.mxu0 0.0
    %352 = vmatprep.subr.mxu0 0.0
    %353 = vmatpush2.msra.mxu0 0.0
    %354 = vmatprep.subr.mxu0 0.0
    %355 = vmatpush2.msra.mxu0 0.0
    %356 = vmatprep.subr.mxu0 0.0
    %357 = vmatpush2.msra.mxu0 0.0
    %358 = vmatprep.subr.mxu0 0.0
    %359 = vmatpush2.msra.mxu0 0.0
    %360 = vmatprep.subr.mxu0 0.0
    %361 = vmatpush2.msra.mxu0 0.0
    %362 = vmatprep.subr.mxu0 0.0
    %363 = vmatpush2.msra.mxu0 0.0
    %364 = vmatprep.subr.mxu0 0.0
    %365 = vmatpush2.msra.mxu0 0.0
    %366 = vmatprep.subr.mxu0 0.0
    %367 = vmatpush2.msra.mxu0 0.0
    %368 = vmatprep.subr.mxu0 0.0
    %369 = vmatpush2.msra.mxu0 0.0
    %370 = vmatprep.mubr.f32.mxu0 0.0
    %371 = vmatmul.mubr.f32.gmra.mxu0 %v283
    %v372 = vpop.f32.mrf.mxu0
    %v373 = vadd.f32 %v244, %v372
    %v374 = vpop.f32.mrf.mxu0
    %375 = vmatprep.mubr.f32.mxu0 0.0
    %376 = vmatmul.mubr.f32.gmra.mxu0 %v286
    %v377 = vpop.f32.mrf.mxu0
    %v378 = vadd.f32 %v249, %v377
    %v379 = vpop.f32.mrf.mxu0
    %380 = vmatprep.mubr.f32.mxu0 0.0
    %381 = vmatmul.mubr.f32.gmra.mxu0 %v289
    %v382 = vpop.f32.mrf.mxu0
    %v383 = vadd.f32 %v254, %v382
    %v384 = vpop.f32.mrf.mxu0
    %385 = vmatprep.mubr.f32.mxu0 0.0
    %386 = vmatmul.mubr.f32.gmra.mxu0 %v292
    %v387 = vpop.f32.mrf.mxu0
    %v388 = vadd.f32 %v259, %v387
    %v389 = vpop.f32.mrf.mxu0
    %390 = vmatprep.mubr.f32.mxu0 0.0
    %391 = vmatmul.mubr.f32.gmra.mxu0 %v295
    %v392 = vpop.f32.mrf.mxu0
    %v393 = vadd.f32 %v264, %v392
    %v394 = vpop.f32.mrf.mxu0
    %395 = vmatprep.mubr.f32.mxu0 0.0
    %396 = vmatmul.mubr.f32.gmra.mxu0 %v298
    %v397 = vpop.f32.mrf.mxu0
    %v398 = vadd.f32 %v269, %v397
    %v399 = vpop.f32.mrf.mxu0
    %400 = vmatprep.mubr.f32.mxu0 0.0
    %401 = vmatmul.mubr.f32.gmra.mxu0 %v301
    %v402 = vpop.f32.mrf.mxu0
    %v403 = vadd.f32 %v274, %v402
    %v404 = vpop.f32.mrf.mxu0
    %405 = vmatprep.mubr.f32.mxu0 0.0
    %406 = vmatmul.mubr.f32.gmra.mxu0 %v304
    %v407 = vpop.f32.mrf.mxu0
    %v408 = vadd.f32 %v279, %v407
    %v409 = vpop.f32.mrf.mxu0
    %410 = vdwg.mxu0
    %v411 = vmax.f32 %v373, 0.0
    %v412 = vmax.f32 %v378, 0.0
    %v413 = vmax.f32 %v383, 0.0
    %v414 = vmax.f32 %v388, 0.0
    %v415 = vmax.f32 %v393, 0.0
    %v416 = vmax.f32 %v398, 0.0
    %v417 = vmax.f32 %v403, 0.0
    %v418 = vmax.f32 %v408, 0.0
    %v419 = vld [vmem:[%s5] sm:$0x3]
    %v420 = vld [vmem:[%s6] sm:$0x3]
    %422 = vset.pattern.permute.xlu0 0
    %423 = vperm.xlu0 %422, %v420
    %v424 = vpop.permute.xlu0 %423
    %v427 = vsel %vm281, %v419, 0
    %429 = vmatprep.subr.mxu0 0.0
    %430 = vmatpush1.msra.mxu0 0.0
    %431 = vmatprep.subr.mxu0 0.0
    %432 = vmatpush1.msra.mxu0 0.0
    %433 = vmatprep.subr.mxu0 0.0
    %434 = vmatpush1.msra.mxu0 0.0
    %435 = vmatprep.subr.mxu0 0.0
    %436 = vmatpush1.msra.mxu0 0.0
    %437 = vmatprep.subr.mxu0 0.0
    %438 = vmatpush1.msra.mxu0 0.0
    %439 = vmatprep.subr.mxu0 0.0
    %440 = vmatpush1.msra.mxu0 0.0
    %441 = vmatprep.subr.mxu0 0.0
    %442 = vmatpush1.msra.mxu0 0.0
    %443 = vmatprep.subr.mxu0 0.0
    %444 = vmatpush1.msra.mxu0 0.0
    %445 = vmatprep.subr.mxu0 0.0
    %446 = vmatpush1.msra.mxu0 %v418
    %447 = vmatprep.subr.mxu0 0.0
    %448 = vmatpush1.msra.mxu0 %v417
    %449 = vmatprep.subr.mxu0 0.0
    %450 = vmatpush1.msra.mxu0 %v416
    %451 = vmatprep.subr.mxu0 0.0
    %452 = vmatpush1.msra.mxu0 %v415
    %453 = vmatprep.subr.mxu0 0.0
    %454 = vmatpush1.msra.mxu0 %v414
    %455 = vmatprep.subr.mxu0 0.0
    %456 = vmatpush1.msra.mxu0 %v413
    %457 = vmatprep.subr.mxu0 0.0
    %458 = vmatpush1.msra.mxu0 %v412
    %459 = vmatprep.subr.mxu0 0.0
    %460 = vmatpush1.msra.mxu0 %v411
    %461 = vmatprep.subr.mxu0 0.0
    %462 = vmatpush2.msra.mxu0 0.0
    %463 = vmatprep.subr.mxu0 0.0
    %464 = vmatpush2.msra.mxu0 0.0
    %465 = vmatprep.subr.mxu0 0.0
    %466 = vmatpush2.msra.mxu0 0.0
    %467 = vmatprep.subr.mxu0 0.0
    %468 = vmatpush2.msra.mxu0 0.0
    %469 = vmatprep.subr.mxu0 0.0
    %470 = vmatpush2.msra.mxu0 0.0
    %471 = vmatprep.subr.mxu0 0.0
    %472 = vmatpush2.msra.mxu0 0.0
    %473 = vmatprep.subr.mxu0 0.0
    %474 = vmatpush2.msra.mxu0 0.0
    %475 = vmatprep.subr.mxu0 0.0
    %476 = vmatpush2.msra.mxu0 0.0
    %477 = vmatprep.subr.mxu0 0.0
    %478 = vmatpush2.msra.mxu0 0.0
    %479 = vmatprep.subr.mxu0 0.0
    %480 = vmatpush2.msra.mxu0 0.0
    %481 = vmatprep.subr.mxu0 0.0
    %482 = vmatpush2.msra.mxu0 0.0
    %483 = vmatprep.subr.mxu0 0.0
    %484 = vmatpush2.msra.mxu0 0.0
    %485 = vmatprep.subr.mxu0 0.0
    %486 = vmatpush2.msra.mxu0 0.0
    %487 = vmatprep.subr.mxu0 0.0
    %488 = vmatpush2.msra.mxu0 0.0
    %489 = vmatprep.subr.mxu0 0.0
    %490 = vmatpush2.msra.mxu0 0.0
    %491 = vmatprep.subr.mxu0 0.0
    %492 = vmatpush2.msra.mxu0 0.0
    %493 = vmatprep.mubr.f32.mxu0 0.0
    %494 = vmatmul.mubr.f32.gmra.mxu0 %v427
    %v495 = vpop.f32.mrf.mxu0
    %v496 = vadd.f32 %v424, %v495
    %v497 = vpop.f32.mrf.mxu0
    %498 = vdwg.mxu0
    %499 = vst [vmem:[#allocation2] sm:$0x1] %v496
    %vm500 = vcmp.gt.f32.partialorder %v496, 20.0
    %v501 = vmin.f32 %v496, 20.0
    %v502 = vmul.f32 %v501, 1.442695
    %v503 = vpow.pop %v502
    %v504 = vadd.f32 %v503, 1.0
    %v505 = vlog2.pop %v504
    %v506 = vmul.f32 %v505, 0.6931472
    %v507 = vmul.f32 -0.5, %v503
    %v508 = vadd.f32 %v507, 1.0
    %v509 = vmul.f32 %v508, %v503
    %v510 = vand.u32 2147483647, %v503
    %vm511 = vcmp.lt.f32.partialorder %v510, 0.0004427343
    %v512 = vsel %vm511, %v509, %v506
    %v513 = vsel %vm500, %v496, %v512
    %514 = vst [vmem:[#allocation4 - $0x1] sm:$0x2] %v513
    // Predicated region
    $region30: #{tpu_custom_call.1} parent=1 // pred_check
      _
    $region31: #{tpu_custom_call.1} parent=1 // pred_check_branch
      %516 = sbr.rel (0) target = $region33
    $region32: #{tpu_custom_call.1} parent=1 // pred_region
      %s518 = ssub.s32 16, 16
      %519 = vsyncadd [#allocation3], %s518
      %s521 = sshll.u32 [#allocation2], 4
      %s522 = int_to_ptr.vmem [resolvable:$true] %s521
      %524 = dma.vmem_to_hbm [thread:$0]  %s522, 16, %s7, [#allocation3]
    $region33: #{tpu_custom_call.1} parent=1 // pred_fallthru
      _
    // Predicated region
    $region34: #{tpu_custom_call.1} parent=1 // pred_check
      _
    $region35: #{tpu_custom_call.1} parent=1 // pred_check_branch
      %526 = sbr.rel (0) target = $region37
    $region36: #{tpu_custom_call.1} parent=1 // pred_region
      %s528 = ssub.s32 16, 16
      %529 = vsyncadd [#allocation5], %s528
      %s531 = sshll.u32 [#allocation4], 4
      %s532 = int_to_ptr.vmem [resolvable:$true] %s531
      %534 = dma.vmem_to_hbm [thread:$0]  %s532, 16, %s8, [#allocation5]
    $region37: #{tpu_custom_call.1} parent=1 // pred_fallthru
      _
    // Predicated region
    $region38: #{tpu_custom_call.1} parent=1 // pred_check
      _
    $region39: #{tpu_custom_call.1} parent=1 // pred_check_branch
      %536 = sbr.rel (0) target = $region41
    $region40: #{tpu_custom_call.1} parent=1 // pred_region
      %537 = dma.done [#allocation3], 16
    $region41: #{tpu_custom_call.1} parent=1 // pred_fallthru
      _
    // Predicated region
    $region42: #{tpu_custom_call.1} parent=1 // pred_check
      _
    $region43: #{tpu_custom_call.1} parent=1 // pred_check_branch
      %539 = sbr.rel (0) target = $region45
    $region44: #{tpu_custom_call.1} parent=1 // pred_region
      %540 = dma.done [#allocation5], 16
    $region45: #{tpu_custom_call.1} parent=1 // pred_fallthru
      _
    %541 = vsyncpa [#allocation3], 1
    %542 = vsyncpa [#allocation5], 1

</llo_original>
